<compile_context>
chip_gen: v5e
topology: v5e:2x2
jax: 0.10.0
libtpu: 0.0.40
codegen_flags: <defaults>
</compile_context>

<pallas_src>
import jax
import jax.numpy as jnp
from jax.experimental import pallas as pl
from jax.experimental.pallas import tpu as pltpu

LANES = 128        # lane width: every matmul operand / activation is lane-dense
W1_VPU_MAX = 32    # layer-1 fan-in threshold for the VPU broadcast-MAC path


def _round_up(x, m):
    return (x + m - 1) // m * m


def _cdiv(a, b):
    return -(-a // b)


def _layout(state_dim, action_dim):
    """Row layout of the packed bf16 weight buffer and the small f32 buffer."""
    input_size = state_dim + action_dim
    use_vpu_l1 = input_size <= W1_VPU_MAX

    lay = {"use_vpu_l1": use_vpu_l1}
    # bf16 weight buffer: blocks aligned to 16 sublanes (bf16 tile height).
    r = 0
    if not use_vpu_l1:
        lay["w1"] = r
        r += _round_up(input_size, 16)
    lay["w2"] = r; r += LANES
    lay["w3"] = r; r += LANES
    lay["w4"] = r; r += LANES
    lay["w_rows"] = r

    # f32 buffer: 4 bias rows (+ W1 rows when layer 1 runs on the VPU).
    fr = 0
    lay["b"] = fr; fr += 4
    if use_vpu_l1:
        lay["w1f"] = fr; fr += input_size
    lay["f_rows"] = _round_up(fr, 8)
    return lay


def pack_params(params, state_dim, action_dim, weights_dtype=jnp.bfloat16):
    """Pack weights into one bf16 tile-aligned buffer + one small f32 buffer.

    Weights are stored as (in, out) in the top-left corner of zero-padded
    blocks, so lane-dense activations contract against them with zero
    contribution from the padding.
    """
    (w1, b1), (w2, b2), (w3, b3), (w4, b4) = params
    input_size = state_dim + action_dim
    hidden = w1.shape[1]
    out_size = w4.shape[1]
    # Fail loudly on unsupported sizes (packed layout assumes <= 128 lanes).
    assert w1.shape == (input_size, hidden)
    assert w2.shape == (hidden, hidden)
    assert w3.shape == (hidden, hidden)
    assert w4.shape == (hidden, out_size)
    assert hidden <= LANES and out_size <= LANES and input_size <= LANES

    lay = _layout(state_dim, action_dim)

    wbuf = jnp.zeros((lay["w_rows"], LANES), jnp.float32)
    if not lay["use_vpu_l1"]:
        wbuf = wbuf.at[lay["w1"]:lay["w1"] + input_size, :hidden].set(w1)
    wbuf = wbuf.at[lay["w2"]:lay["w2"] + hidden, :hidden].set(w2)
    wbuf = wbuf.at[lay["w3"]:lay["w3"] + hidden, :hidden].set(w3)
    wbuf = wbuf.at[lay["w4"]:lay["w4"] + hidden, :out_size].set(w4)
    wbuf = wbuf.astype(weights_dtype)

    fbuf = jnp.zeros((lay["f_rows"], LANES), jnp.float32)
    fbuf = fbuf.at[lay["b"] + 0, :hidden].set(b1)
    fbuf = fbuf.at[lay["b"] + 1, :hidden].set(b2)
    fbuf = fbuf.at[lay["b"] + 2, :hidden].set(b3)
    fbuf = fbuf.at[lay["b"] + 3, :out_size].set(b4)
    if lay["use_vpu_l1"]:
        fbuf = fbuf.at[lay["w1f"]:lay["w1f"] + input_size, :hidden].set(w1)
    return wbuf, fbuf


def _make_kernel(state_dim, action_dim, lay, out_rows, w_dtype):
    input_size = state_dim + action_dim
    r_w2, r_w3, r_w4, r_b = lay["w2"], lay["w3"], lay["w4"], lay["b"]

    def kernel(s_ref, a_ref, w_ref, f_ref, out_ref):
        s = s_ref[...]                                   # (TB, state_dim) f32
        a = a_ref[...]                                   # (TB, action_dim) f32
        b1 = f_ref[r_b + 0:r_b + 1, :]
        b2 = f_ref[r_b + 1:r_b + 2, :]
        b3 = f_ref[r_b + 2:r_b + 3, :]
        b4 = f_ref[r_b + 3:r_b + 4, :]

        # ---- layer 1: relu(s @ W1s + a @ W1a + b1), implicit concat.
        if lay["use_vpu_l1"]:
            # Tiny fan-in: unrolled broadcast-MACs on the VPU, all f32.
            w1f = lay["w1f"]
            h = b1
            for k in range(state_dim):
                h = h + s[:, k:k + 1] * f_ref[w1f + k:w1f + k + 1, :]
            for k in range(action_dim):
                h = h + a[:, k:k + 1] * f_ref[w1f + state_dim + k:
                                              w1f + state_dim + k + 1, :]
        else:
            r_w1 = lay["w1"]
            h = (jnp.dot(s.astype(w_dtype), w_ref[r_w1:r_w1 + state_dim, :],
                         preferred_element_type=jnp.float32)
                 + jnp.dot(a.astype(w_dtype),
                           w_ref[r_w1 + state_dim:r_w1 + input_size, :],
                           preferred_element_type=jnp.float32)
                 + b1)
        h = jnp.maximum(h, 0.0)

        # ---- layers 2/3: bf16 MXU matmuls, f32 accumulate / bias / relu.
        h = jnp.maximum(
            jnp.dot(h.astype(w_dtype), w_ref[r_w2:r_w2 + LANES, :],
                    preferred_element_type=jnp.float32) + b2, 0.0)
        h = jnp.maximum(
            jnp.dot(h.astype(w_dtype), w_ref[r_w3:r_w3 + LANES, :],
                    preferred_element_type=jnp.float32) + b3, 0.0)

        # ---- layer 4 (no relu). Transpose on the XLU so the store is a
        # small (out_rows, TB) lane-dense slab, not a 128x-inflated block.
        out = (jnp.dot(h.astype(w_dtype), w_ref[r_w4:r_w4 + LANES, :],
                       preferred_element_type=jnp.float32) + b4)  # (TB, 128)
        out_t = out.T                                             # (128, TB)
        out_ref[...] = out_t[:out_rows, :].astype(out_ref.dtype)

    return kernel


def critic_forward(s, a, w_packed, b_packed, out_size):
    """s: (B, state_dim), a: (B, action_dim) -> (B, out_size)."""
    B, state_dim = s.shape
    action_dim = a.shape[1]
    lay = _layout(state_dim, action_dim)
    out_rows = _round_up(out_size, 8)

    # Batch tiling: fat tiles (up to 1024 rows) since the kernel is
    # overhead-bound; TB is always a multiple of 128 so stores/transposes are
    # unmasked and lane-dense; even step count when tiled so both v7x
    # TensorCores get balanced work.
    MAX_TB = 1024
    if B <= 2 * LANES:
        TB = _round_up(max(B, LANES), LANES)
        B_pad = TB
    else:
        n_steps = max(2, _cdiv(B, MAX_TB))
        n_steps += n_steps % 2
        TB = _round_up(_cdiv(B, n_steps), LANES)
        B_pad = _round_up(B, TB)
    if B_pad != B:
        s = jnp.pad(s, ((0, B_pad - B), (0, 0)))
        a = jnp.pad(a, ((0, B_pad - B), (0, 0)))

    kernel = _make_kernel(state_dim, action_dim, lay, out_rows, w_packed.dtype)
    grid = (B_pad // TB,)

    flops = 2 * B_pad * ((state_dim + action_dim) * LANES + 3 * LANES * LANES)
    bytes_accessed = (w_packed.size * w_packed.dtype.itemsize
                      + b_packed.size * b_packed.dtype.itemsize
                      + B_pad * (state_dim + action_dim) * 4
                      + out_rows * B_pad * 4)

    out_t = pl.pallas_call(
        kernel,
        out_shape=jax.ShapeDtypeStruct((out_rows, B_pad), jnp.float32),
        grid=grid,
        in_specs=[
            pl.BlockSpec((TB, state_dim), lambda i: (i, 0)),
            pl.BlockSpec((TB, action_dim), lambda i: (i, 0)),
            # Constant block index: one DMA each, stay VMEM-resident.
            pl.BlockSpec(w_packed.shape, lambda i: (0, 0)),
            pl.BlockSpec(b_packed.shape, lambda i: (0, 0)),
        ],
        out_specs=pl.BlockSpec((out_rows, TB), lambda i: (0, i)),
        compiler_params=pltpu.CompilerParams(
            dimension_semantics=("parallel",)),
        cost_estimate=pl.CostEstimate(
            flops=flops, transcendentals=0, bytes_accessed=bytes_accessed),
    )(s, a, w_packed, b_packed)

    # (out_size, B) -> (B, out_size): tiny compared to the padded buffer.
    return out_t[:out_size, :B].T


def init_params(key, input_size, hidden_size, output_size):
    """nn.Linear-style init U(-1/sqrt(fan_in), +); weights stored as (in, out)."""
    dims = [(input_size, hidden_size), (hidden_size, hidden_size),
            (hidden_size, hidden_size), (hidden_size, output_size)]
    params = []
    for fan_in, fan_out in dims:
        key, kw, kb = jax.random.split(key, 3)
        bound = 1.0 / float(fan_in) ** 0.5
        w = jax.random.uniform(kw, (fan_in, fan_out), jnp.float32, -bound, bound)
        b = jax.random.uniform(kb, (fan_out,), jnp.float32, -bound, bound)
        params.append((w, b))
    return params


def critic_reference(s, a, params):
    x = jnp.concatenate([s, a], axis=1)
    (w1, b1), (w2, b2), (w3, b3), (w4, b4) = params
    x = jax.nn.relu(x @ w1 + b1)
    x = jax.nn.relu(x @ w2 + b2)
    x = jax.nn.relu(x @ w3 + b3)
    return x @ w4 + b4


if __name__ == "__main__":
    # CartPole-ish sizes: state_dim=4, action_dim=1 -> input_size=5
    batch = 2
    state_dim, action_dim = 4, 1
    input_size = state_dim + action_dim
    hidden_size = 32
    output_size = 1

    key = jax.random.PRNGKey(0)
    k_s, k_a, k_p = jax.random.split(key, 3)
    s = jax.random.normal(k_s, (batch, state_dim), jnp.float32)
    a = jax.random.normal(k_a, (batch, action_dim), jnp.float32)
    params = init_params(k_p, input_size, hidden_size, output_size)
    # Done once at init: bf16 weights (halved DMA, native MXU path), f32 biases.
    w_packed, b_packed = pack_params(params, state_dim, action_dim)

    fwd = jax.jit(critic_forward, static_argnames=("out_size",))
    out = fwd(s, a, w_packed, b_packed, out_size=output_size)
    out = jax.block_until_ready(out)

    ref = critic_reference(s, a, params)
    assert out.shape == (batch, output_size)
    # Layers 2-4 use bf16 weights/operands with f32 accumulation, so compare
    # at bf16-level tolerance (expected precision loss, not a kernel bug).
    assert jnp.allclose(out, ref, atol=3e-2, rtol=3e-2), (out, ref)

    print("KERNEL_OK")
</pallas_src>

<mosaic_0001>
module attributes {stable_mosaic.version = 11 : i64} {
  func.func @kernel(%arg0: i32, %arg1: memref<128x4xf32, #tpu.memory_space<vmem>>, %arg2: memref<128x1xf32, #tpu.memory_space<vmem>>, %arg3: memref<384x128xbf16, #tpu.memory_space<vmem>>, %arg4: memref<16x128xf32, #tpu.memory_space<vmem>>, %arg5: memref<8x128xf32, #tpu.memory_space<vmem>>) attributes {dimension_semantics = [#tpu.dimension_semantics<parallel>], iteration_bounds = array<i64: 1>, scalar_prefetch = 0 : i64, scratch_operands = 0 : i64, tpu.core_type = #tpu.core_type<tc>, window_params = [{transform_indices = @transform_0, window_bounds = array<i64: 128, 4>}, {transform_indices = @transform_1, window_bounds = array<i64: 128, 1>}, {pipeline_mode = #tpu.pipeline_mode<synchronous>, transform_indices = @transform_2, window_bounds = array<i64: 384, 128>}, {pipeline_mode = #tpu.pipeline_mode<synchronous>, transform_indices = @transform_3, window_bounds = array<i64: 16, 128>}, {transform_indices = @transform_4, window_bounds = array<i64: 8, 128>}]} {
    %c0 = arith.constant 0 : index
    %c0_0 = arith.constant 0 : index
    %0 = vector.load %arg1[%c0, %c0_0] : memref<128x4xf32, #tpu.memory_space<vmem>>, vector<128x4xf32>
    %c0_1 = arith.constant 0 : index
    %c0_2 = arith.constant 0 : index
    %1 = vector.load %arg2[%c0_1, %c0_2] : memref<128x1xf32, #tpu.memory_space<vmem>>, vector<128x1xf32>
    %c0_3 = arith.constant 0 : index
    %c0_4 = arith.constant 0 : index
    %2 = vector.load %arg4[%c0_3, %c0_4] : memref<16x128xf32, #tpu.memory_space<vmem>>, vector<1x128xf32>
    %c1 = arith.constant 1 : index
    %c0_5 = arith.constant 0 : index
    %3 = vector.load %arg4[%c1, %c0_5] : memref<16x128xf32, #tpu.memory_space<vmem>>, vector<1x128xf32>
    %c2 = arith.constant 2 : index
    %c0_6 = arith.constant 0 : index
    %4 = vector.load %arg4[%c2, %c0_6] : memref<16x128xf32, #tpu.memory_space<vmem>>, vector<1x128xf32>
    %c3 = arith.constant 3 : index
    %c0_7 = arith.constant 0 : index
    %5 = vector.load %arg4[%c3, %c0_7] : memref<16x128xf32, #tpu.memory_space<vmem>>, vector<1x128xf32>
    %6 = vector.extract_strided_slice %0 {offsets = [0, 0], sizes = [128, 1], strides = [1, 1]} : vector<128x4xf32> to vector<128x1xf32>
    %c4 = arith.constant 4 : index
    %c0_8 = arith.constant 0 : index
    %7 = vector.load %arg4[%c4, %c0_8] : memref<16x128xf32, #tpu.memory_space<vmem>>, vector<1x128xf32>
    %8 = vector.broadcast %6 : vector<128x1xf32> to vector<128x128xf32>
    %9 = vector.broadcast %7 : vector<1x128xf32> to vector<128x128xf32>
    %10 = arith.mulf %8, %9 : vector<128x128xf32>
    %11 = vector.broadcast %2 : vector<1x128xf32> to vector<128x128xf32>
    %12 = arith.addf %11, %10 : vector<128x128xf32>
    %13 = vector.extract_strided_slice %0 {offsets = [0, 1], sizes = [128, 1], strides = [1, 1]} : vector<128x4xf32> to vector<128x1xf32>
    %c5 = arith.constant 5 : index
    %c0_9 = arith.constant 0 : index
    %14 = vector.load %arg4[%c5, %c0_9] : memref<16x128xf32, #tpu.memory_space<vmem>>, vector<1x128xf32>
    %15 = vector.broadcast %13 : vector<128x1xf32> to vector<128x128xf32>
    %16 = vector.broadcast %14 : vector<1x128xf32> to vector<128x128xf32>
    %17 = arith.mulf %15, %16 : vector<128x128xf32>
    %18 = arith.addf %12, %17 : vector<128x128xf32>
    %19 = vector.extract_strided_slice %0 {offsets = [0, 2], sizes = [128, 1], strides = [1, 1]} : vector<128x4xf32> to vector<128x1xf32>
    %c6 = arith.constant 6 : index
    %c0_10 = arith.constant 0 : index
    %20 = vector.load %arg4[%c6, %c0_10] : memref<16x128xf32, #tpu.memory_space<vmem>>, vector<1x128xf32>
    %21 = vector.broadcast %19 : vector<128x1xf32> to vector<128x128xf32>
    %22 = vector.broadcast %20 : vector<1x128xf32> to vector<128x128xf32>
    %23 = arith.mulf %21, %22 : vector<128x128xf32>
    %24 = arith.addf %18, %23 : vector<128x128xf32>
    %25 = vector.extract_strided_slice %0 {offsets = [0, 3], sizes = [128, 1], strides = [1, 1]} : vector<128x4xf32> to vector<128x1xf32>
    %c7 = arith.constant 7 : index
    %c0_11 = arith.constant 0 : index
    %26 = vector.load %arg4[%c7, %c0_11] : memref<16x128xf32, #tpu.memory_space<vmem>>, vector<1x128xf32>
    %27 = vector.broadcast %25 : vector<128x1xf32> to vector<128x128xf32>
    %28 = vector.broadcast %26 : vector<1x128xf32> to vector<128x128xf32>
    %29 = arith.mulf %27, %28 : vector<128x128xf32>
    %30 = arith.addf %24, %29 : vector<128x128xf32>
    %c8 = arith.constant 8 : index
    %c0_12 = arith.constant 0 : index
    %31 = vector.load %arg4[%c8, %c0_12] : memref<16x128xf32, #tpu.memory_space<vmem>>, vector<1x128xf32>
    %32 = vector.broadcast %1 : vector<128x1xf32> to vector<128x128xf32>
    %33 = vector.broadcast %31 : vector<1x128xf32> to vector<128x128xf32>
    %34 = arith.mulf %32, %33 : vector<128x128xf32>
    %35 = arith.addf %30, %34 : vector<128x128xf32>
    %cst = arith.constant 0.000000e+00 : f32
    %36 = vector.broadcast %cst : f32 to vector<128x128xf32>
    %37 = arith.maximumf %35, %36 : vector<128x128xf32>
    %38 = arith.truncf %37 : vector<128x128xf32> to vector<128x128xbf16>
    %c0_13 = arith.constant 0 : index
    %c0_14 = arith.constant 0 : index
    %39 = vector.load %arg3[%c0_13, %c0_14] : memref<384x128xbf16, #tpu.memory_space<vmem>>, vector<128x128xbf16>
    %cst_15 = arith.constant dense<0.000000e+00> : vector<128x128xf32>
    %40 = tpu.matmul %38, %39, %cst_15 {dimension_numbers = #tpu.dot_dimension_numbers<[1], [0], [0], [1], [0, 0, 1, 1], [], []>} : vector<128x128xbf16>, vector<128x128xbf16>, vector<128x128xf32> -> vector<128x128xf32>
    %41 = vector.broadcast %3 : vector<1x128xf32> to vector<128x128xf32>
    %42 = arith.addf %40, %41 : vector<128x128xf32>
    %cst_16 = arith.constant 0.000000e+00 : f32
    %43 = vector.broadcast %cst_16 : f32 to vector<128x128xf32>
    %44 = arith.maximumf %42, %43 : vector<128x128xf32>
    %45 = arith.truncf %44 : vector<128x128xf32> to vector<128x128xbf16>
    %c128 = arith.constant 128 : index
    %c0_17 = arith.constant 0 : index
    %46 = vector.load %arg3[%c128, %c0_17] : memref<384x128xbf16, #tpu.memory_space<vmem>>, vector<128x128xbf16>
    %cst_18 = arith.constant dense<0.000000e+00> : vector<128x128xf32>
    %47 = tpu.matmul %45, %46, %cst_18 {dimension_numbers = #tpu.dot_dimension_numbers<[1], [0], [0], [1], [0, 0, 1, 1], [], []>} : vector<128x128xbf16>, vector<128x128xbf16>, vector<128x128xf32> -> vector<128x128xf32>
    %48 = vector.broadcast %4 : vector<1x128xf32> to vector<128x128xf32>
    %49 = arith.addf %47, %48 : vector<128x128xf32>
    %cst_19 = arith.constant 0.000000e+00 : f32
    %50 = vector.broadcast %cst_19 : f32 to vector<128x128xf32>
    %51 = arith.maximumf %49, %50 : vector<128x128xf32>
    %52 = arith.truncf %51 : vector<128x128xf32> to vector<128x128xbf16>
    %c256 = arith.constant 256 : index
    %c0_20 = arith.constant 0 : index
    %53 = vector.load %arg3[%c256, %c0_20] : memref<384x128xbf16, #tpu.memory_space<vmem>>, vector<128x128xbf16>
    %cst_21 = arith.constant dense<0.000000e+00> : vector<128x128xf32>
    %54 = tpu.matmul %52, %53, %cst_21 {dimension_numbers = #tpu.dot_dimension_numbers<[1], [0], [0], [1], [0, 0, 1, 1], [], []>} : vector<128x128xbf16>, vector<128x128xbf16>, vector<128x128xf32> -> vector<128x128xf32>
    %55 = vector.broadcast %5 : vector<1x128xf32> to vector<128x128xf32>
    %56 = arith.addf %54, %55 : vector<128x128xf32>
    %57 = tpu.transpose %56, [1, 0] : vector<128x128xf32> -> vector<128x128xf32>
    %58 = vector.extract_strided_slice %57 {offsets = [0, 0], sizes = [8, 128], strides = [1, 1]} : vector<128x128xf32> to vector<8x128xf32>
    %c0_22 = arith.constant 0 : index
    %c0_23 = arith.constant 0 : index
    %59 = vector.load %arg5[%c0_22, %c0_23] : memref<8x128xf32, #tpu.memory_space<vmem>>, vector<8x128xf32>
    tpu.vector_store %arg5[%c0_22, %c0_23], %58 {strides = array<i32>} : memref<8x128xf32, #tpu.memory_space<vmem>>, vector<8x128xf32>,
    return
  }
  func.func @transform_0(%arg0: i32) -> (i32, i32) {
    %c0_i32 = arith.constant 0 : i32
    %c0_i32_0 = arith.constant 0 : i32
    return %arg0, %c0_i32 : i32, i32
  }
  func.func @transform_1(%arg0: i32) -> (i32, i32) {
    %c0_i32 = arith.constant 0 : i32
    %c0_i32_0 = arith.constant 0 : i32
    return %arg0, %c0_i32 : i32, i32
  }
  func.func @transform_2(%arg0: i32) -> (i32, i32) {
    %c0_i32 = arith.constant 0 : i32
    %c0_i32_0 = arith.constant 0 : i32
    %c0_i32_1 = arith.constant 0 : i32
    return %c0_i32, %c0_i32_0 : i32, i32
  }
  func.func @transform_3(%arg0: i32) -> (i32, i32) {
    %c0_i32 = arith.constant 0 : i32
    %c0_i32_0 = arith.constant 0 : i32
    %c0_i32_1 = arith.constant 0 : i32
    return %c0_i32, %c0_i32_0 : i32, i32
  }
  func.func @transform_4(%arg0: i32) -> (i32, i32) {
    %c0_i32 = arith.constant 0 : i32
    %c0_i32_0 = arith.constant 0 : i32
    return %c0_i32, %arg0 : i32, i32
  }
}

</mosaic_0001>

<llo_original>
// kernel: critic_forward.1
$region0: #{critic_forward.1}
  #allocation0 [shape = 'u32[]', space=smem, size = 0x4, offset = 0x4, fixed_abs, tag = 'smem constant byte address 0x4 - core index']
  #allocation1 [shape = 'u32[72,128]{1,0:T(1,128)}', space=vmem, size = 0x9000, scoped, tag = 'internal scratch']
  %s0 = inlined_call_operand.vmem [shape: f32[128,4], index: 0, kind: input, shape index: {}]
  %s1 = inlined_call_operand.vmem [shape: f32[128,1], index: 1, kind: input, shape index: {}]
  %s2 = inlined_call_operand.vmem [shape: bf16[384,128], index: 2, kind: input, shape index: {}]
  %s3 = inlined_call_operand.vmem [shape: f32[16,128], index: 3, kind: input, shape index: {}]
  %s4 = inlined_call_operand.vmem [shape: f32[8,128], index: 4, kind: output, shape index: {}]
  %s5 = sld [smem:[#allocation0]]
  $region26: #{critic_forward.1} parent=0
    _
  %s7 = ssub.s32 1, %s5
  %s8 = scalar_select 0, %s7, %s5
  // Predicated region
  $region2: #{critic_forward.1} parent=0 // pred_check
    _
  $region3: #{critic_forward.1} parent=0 // pred_check_branch
    %10 = sbr.rel (0) target = $region5
  $region4: #{critic_forward.1} parent=0 // pred_region
    _
  $region5: #{critic_forward.1} parent=0 // pred_fallthru
    _
  // Predicated region
  $region6: #{critic_forward.1} parent=0 // pred_check
    _
  $region7: #{critic_forward.1} parent=0 // pred_check_branch
    %12 = sbr.rel (0) target = $region9
  $region8: #{critic_forward.1} parent=0 // pred_region
    _
  $region9: #{critic_forward.1} parent=0 // pred_fallthru
    _
  // Predicated region
  $region10: #{critic_forward.1} parent=0 // pred_check
    _
  $region11: #{critic_forward.1} parent=0 // pred_check_branch
    %14 = sbr.rel (0) target = $region13
  $region12: #{critic_forward.1} parent=0 // pred_region
    _
  $region13: #{critic_forward.1} parent=0 // pred_fallthru
    _
  // Predicated region
  $region14: #{critic_forward.1} parent=0 // pred_check
    _
  $region15: #{critic_forward.1} parent=0 // pred_check_branch
    %16 = sbr.rel (0) target = $region17
  $region16: #{critic_forward.1} parent=0 // pred_region
    _
  $region17: #{critic_forward.1} parent=0 // pred_fallthru
    _
  %v17 = vld [vmem:[%s0] sm:$0xff]
  %v18 = vld [vmem:[%s0 + $0x8] sm:$0xff]
  %v19 = vld [vmem:[%s0 + $0x10] sm:$0xff]
  %v20 = vld [vmem:[%s0 + $0x18] sm:$0xff]
  %v21 = vld [vmem:[%s0 + $0x20] sm:$0xff]
  %v22 = vld [vmem:[%s0 + $0x28] sm:$0xff]
  %v23 = vld [vmem:[%s0 + $0x30] sm:$0xff]
  %v24 = vld [vmem:[%s0 + $0x38] sm:$0xff]
  %v25 = vld [vmem:[%s0 + $0x40] sm:$0xff]
  %v26 = vld [vmem:[%s0 + $0x48] sm:$0xff]
  %v27 = vld [vmem:[%s0 + $0x50] sm:$0xff]
  %v28 = vld [vmem:[%s0 + $0x58] sm:$0xff]
  %v29 = vld [vmem:[%s0 + $0x60] sm:$0xff]
  %v30 = vld [vmem:[%s0 + $0x68] sm:$0xff]
  %v31 = vld [vmem:[%s0 + $0x70] sm:$0xff]
  %v32 = vld [vmem:[%s0 + $0x78] sm:$0xff]
  %v33 = vld [vmem:[%s1] sm:$0xff]
  %v34 = vld [vmem:[%s1 + $0x8] sm:$0xff]
  %v35 = vld [vmem:[%s1 + $0x10] sm:$0xff]
  %v36 = vld [vmem:[%s1 + $0x18] sm:$0xff]
  %v37 = vld [vmem:[%s1 + $0x20] sm:$0xff]
  %v38 = vld [vmem:[%s1 + $0x28] sm:$0xff]
  %v39 = vld [vmem:[%s1 + $0x30] sm:$0xff]
  %v40 = vld [vmem:[%s1 + $0x38] sm:$0xff]
  %v41 = vld [vmem:[%s1 + $0x40] sm:$0xff]
  %v42 = vld [vmem:[%s1 + $0x48] sm:$0xff]
  %v43 = vld [vmem:[%s1 + $0x50] sm:$0xff]
  %v44 = vld [vmem:[%s1 + $0x58] sm:$0xff]
  %v45 = vld [vmem:[%s1 + $0x60] sm:$0xff]
  %v46 = vld [vmem:[%s1 + $0x68] sm:$0xff]
  %v47 = vld [vmem:[%s1 + $0x70] sm:$0xff]
  %v48 = vld [vmem:[%s1 + $0x78] sm:$0xff]
  %v49 = vld [vmem:[%s3] sm:$0x1]
  %v50 = vld [vmem:[%s3 + $0x1] sm:$0x1]
  %v51 = vld [vmem:[%s3 + $0x2] sm:$0x1]
  %v52 = vld [vmem:[%s3 + $0x3] sm:$0x1]
  %v53 = vld [vmem:[%s3 + $0x4] sm:$0x1]
  %55 = vset.pattern.permute.xlu0 0
  %56 = vperm.xlu0 %55, %v17
  %v57 = vpop.permute.xlu0 %56
  %60 = vset.pattern.permute.xlu0 0
  %61 = vperm.xlu0 %60, %v18
  %v62 = vpop.permute.xlu0 %61
  %65 = vset.pattern.permute.xlu0 0
  %66 = vperm.xlu0 %65, %v19
  %v67 = vpop.permute.xlu0 %66
  %70 = vset.pattern.permute.xlu0 0
  %71 = vperm.xlu0 %70, %v20
  %v72 = vpop.permute.xlu0 %71
  %75 = vset.pattern.permute.xlu0 0
  %76 = vperm.xlu0 %75, %v21
  %v77 = vpop.permute.xlu0 %76
  %80 = vset.pattern.permute.xlu0 0
  %81 = vperm.xlu0 %80, %v22
  %v82 = vpop.permute.xlu0 %81
  %85 = vset.pattern.permute.xlu0 0
  %86 = vperm.xlu0 %85, %v23
  %v87 = vpop.permute.xlu0 %86
  %90 = vset.pattern.permute.xlu0 0
  %91 = vperm.xlu0 %90, %v24
  %v92 = vpop.permute.xlu0 %91
  %95 = vset.pattern.permute.xlu0 0
  %96 = vperm.xlu0 %95, %v25
  %v97 = vpop.permute.xlu0 %96
  %100 = vset.pattern.permute.xlu0 0
  %101 = vperm.xlu0 %100, %v26
  %v102 = vpop.permute.xlu0 %101
  %105 = vset.pattern.permute.xlu0 0
  %106 = vperm.xlu0 %105, %v27
  %v107 = vpop.permute.xlu0 %106
  %110 = vset.pattern.permute.xlu0 0
  %111 = vperm.xlu0 %110, %v28
  %v112 = vpop.permute.xlu0 %111
  %115 = vset.pattern.permute.xlu0 0
  %116 = vperm.xlu0 %115, %v29
  %v117 = vpop.permute.xlu0 %116
  %120 = vset.pattern.permute.xlu0 0
  %121 = vperm.xlu0 %120, %v30
  %v122 = vpop.permute.xlu0 %121
  %125 = vset.pattern.permute.xlu0 0
  %126 = vperm.xlu0 %125, %v31
  %v127 = vpop.permute.xlu0 %126
  %130 = vset.pattern.permute.xlu0 0
  %131 = vperm.xlu0 %130, %v32
  %v132 = vpop.permute.xlu0 %131
  %v134 = vperm.slane %v53, 0
  %v135 = vmul.f32 %v57, %v134
  %v136 = vmul.f32 %v62, %v134
  %v137 = vmul.f32 %v67, %v134
  %v138 = vmul.f32 %v72, %v134
  %v139 = vmul.f32 %v77, %v134
  %v140 = vmul.f32 %v82, %v134
  %v141 = vmul.f32 %v87, %v134
  %v142 = vmul.f32 %v92, %v134
  %v143 = vmul.f32 %v97, %v134
  %v144 = vmul.f32 %v102, %v134
  %v145 = vmul.f32 %v107, %v134
  %v146 = vmul.f32 %v112, %v134
  %v147 = vmul.f32 %v117, %v134
  %v148 = vmul.f32 %v122, %v134
  %v149 = vmul.f32 %v127, %v134
  %v150 = vmul.f32 %v132, %v134
  %v151 = vperm.slane %v49, 0
  %v152 = vadd.f32 %v151, %v135
  %v153 = vadd.f32 %v151, %v136
  %v154 = vadd.f32 %v151, %v137
  %v155 = vadd.f32 %v151, %v138
  %v156 = vadd.f32 %v151, %v139
  %v157 = vadd.f32 %v151, %v140
  %v158 = vadd.f32 %v151, %v141
  %v159 = vadd.f32 %v151, %v142
  %v160 = vadd.f32 %v151, %v143
  %v161 = vadd.f32 %v151, %v144
  %v162 = vadd.f32 %v151, %v145
  %v163 = vadd.f32 %v151, %v146
  %v164 = vadd.f32 %v151, %v147
  %v165 = vadd.f32 %v151, %v148
  %v166 = vadd.f32 %v151, %v149
  %v167 = vadd.f32 %v151, %v150
  %v168 = vld [vmem:[%s3 + $0x5] sm:$0x1]
  %169 = vset.pattern.permute.xlu0 1
  %170 = vperm.xlu0 %169, %v17
  %v171 = vpop.permute.xlu0 %170
  %173 = vset.pattern.permute.xlu0 1
  %174 = vperm.xlu0 %173, %v18
  %v175 = vpop.permute.xlu0 %174
  %177 = vset.pattern.permute.xlu0 1
  %178 = vperm.xlu0 %177, %v19
  %v179 = vpop.permute.xlu0 %178
  %181 = vset.pattern.permute.xlu0 1
  %182 = vperm.xlu0 %181, %v20
  %v183 = vpop.permute.xlu0 %182
  %185 = vset.pattern.permute.xlu0 1
  %186 = vperm.xlu0 %185, %v21
  %v187 = vpop.permute.xlu0 %186
  %189 = vset.pattern.permute.xlu0 1
  %190 = vperm.xlu0 %189, %v22
  %v191 = vpop.permute.xlu0 %190
  %193 = vset.pattern.permute.xlu0 1
  %194 = vperm.xlu0 %193, %v23
  %v195 = vpop.permute.xlu0 %194
  %197 = vset.pattern.permute.xlu0 1
  %198 = vperm.xlu0 %197, %v24
  %v199 = vpop.permute.xlu0 %198
  %201 = vset.pattern.permute.xlu0 1
  %202 = vperm.xlu0 %201, %v25
  %v203 = vpop.permute.xlu0 %202
  %205 = vset.pattern.permute.xlu0 1
  %206 = vperm.xlu0 %205, %v26
  %v207 = vpop.permute.xlu0 %206
  %209 = vset.pattern.permute.xlu0 1
  %210 = vperm.xlu0 %209, %v27
  %v211 = vpop.permute.xlu0 %210
  %213 = vset.pattern.permute.xlu0 1
  %214 = vperm.xlu0 %213, %v28
  %v215 = vpop.permute.xlu0 %214
  %217 = vset.pattern.permute.xlu0 1
  %218 = vperm.xlu0 %217, %v29
  %v219 = vpop.permute.xlu0 %218
  %221 = vset.pattern.permute.xlu0 1
  %222 = vperm.xlu0 %221, %v30
  %v223 = vpop.permute.xlu0 %222
  %225 = vset.pattern.permute.xlu0 1
  %226 = vperm.xlu0 %225, %v31
  %v227 = vpop.permute.xlu0 %226
  %229 = vset.pattern.permute.xlu0 1
  %230 = vperm.xlu0 %229, %v32
  %v231 = vpop.permute.xlu0 %230
  %v233 = vperm.slane %v168, 0
  %v234 = vmul.f32 %v171, %v233
  %v235 = vmul.f32 %v175, %v233
  %v236 = vmul.f32 %v179, %v233
  %v237 = vmul.f32 %v183, %v233
  %v238 = vmul.f32 %v187, %v233
  %v239 = vmul.f32 %v191, %v233
  %v240 = vmul.f32 %v195, %v233
  %v241 = vmul.f32 %v199, %v233
  %v242 = vmul.f32 %v203, %v233
  %v243 = vmul.f32 %v207, %v233
  %v244 = vmul.f32 %v211, %v233
  %v245 = vmul.f32 %v215, %v233
  %v246 = vmul.f32 %v219, %v233
  %v247 = vmul.f32 %v223, %v233
  %v248 = vmul.f32 %v227, %v233
  %v249 = vmul.f32 %v231, %v233
  %v250 = vadd.f32 %v152, %v234
  %v251 = vadd.f32 %v153, %v235
  %v252 = vadd.f32 %v154, %v236
  %v253 = vadd.f32 %v155, %v237
  %v254 = vadd.f32 %v156, %v238
  %v255 = vadd.f32 %v157, %v239
  %v256 = vadd.f32 %v158, %v240
  %v257 = vadd.f32 %v159, %v241
  %v258 = vadd.f32 %v160, %v242
  %v259 = vadd.f32 %v161, %v243
  %v260 = vadd.f32 %v162, %v244
  %v261 = vadd.f32 %v163, %v245
  %v262 = vadd.f32 %v164, %v246
  %v263 = vadd.f32 %v165, %v247
  %v264 = vadd.f32 %v166, %v248
  %v265 = vadd.f32 %v167, %v249
  %v266 = vld [vmem:[%s3 + $0x6] sm:$0x1]
  %267 = vset.pattern.permute.xlu0 2
  %268 = vperm.xlu0 %267, %v17
  %v269 = vpop.permute.xlu0 %268
  %271 = vset.pattern.permute.xlu0 2
  %272 = vperm.xlu0 %271, %v18
  %v273 = vpop.permute.xlu0 %272
  %275 = vset.pattern.permute.xlu0 2
  %276 = vperm.xlu0 %275, %v19
  %v277 = vpop.permute.xlu0 %276
  %279 = vset.pattern.permute.xlu0 2
  %280 = vperm.xlu0 %279, %v20
  %v281 = vpop.permute.xlu0 %280
  %283 = vset.pattern.permute.xlu0 2
  %284 = vperm.xlu0 %283, %v21
  %v285 = vpop.permute.xlu0 %284
  %287 = vset.pattern.permute.xlu0 2
  %288 = vperm.xlu0 %287, %v22
  %v289 = vpop.permute.xlu0 %288
  %291 = vset.pattern.permute.xlu0 2
  %292 = vperm.xlu0 %291, %v23
  %v293 = vpop.permute.xlu0 %292
  %295 = vset.pattern.permute.xlu0 2
  %296 = vperm.xlu0 %295, %v24
  %v297 = vpop.permute.xlu0 %296
  %299 = vset.pattern.permute.xlu0 2
  %300 = vperm.xlu0 %299, %v25
  %v301 = vpop.permute.xlu0 %300
  %303 = vset.pattern.permute.xlu0 2
  %304 = vperm.xlu0 %303, %v26
  %v305 = vpop.permute.xlu0 %304
  %307 = vset.pattern.permute.xlu0 2
  %308 = vperm.xlu0 %307, %v27
  %v309 = vpop.permute.xlu0 %308
  %311 = vset.pattern.permute.xlu0 2
  %312 = vperm.xlu0 %311, %v28
  %v313 = vpop.permute.xlu0 %312
  %315 = vset.pattern.permute.xlu0 2
  %316 = vperm.xlu0 %315, %v29
  %v317 = vpop.permute.xlu0 %316
  %319 = vset.pattern.permute.xlu0 2
  %320 = vperm.xlu0 %319, %v30
  %v321 = vpop.permute.xlu0 %320
  %323 = vset.pattern.permute.xlu0 2
  %324 = vperm.xlu0 %323, %v31
  %v325 = vpop.permute.xlu0 %324
  %327 = vset.pattern.permute.xlu0 2
  %328 = vperm.xlu0 %327, %v32
  %v329 = vpop.permute.xlu0 %328
  %v331 = vperm.slane %v266, 0
  %v332 = vmul.f32 %v269, %v331
  %v333 = vmul.f32 %v273, %v331
  %v334 = vmul.f32 %v277, %v331
  %v335 = vmul.f32 %v281, %v331
  %v336 = vmul.f32 %v285, %v331
  %v337 = vmul.f32 %v289, %v331
  %v338 = vmul.f32 %v293, %v331
  %v339 = vmul.f32 %v297, %v331
  %v340 = vmul.f32 %v301, %v331
  %v341 = vmul.f32 %v305, %v331
  %v342 = vmul.f32 %v309, %v331
  %v343 = vmul.f32 %v313, %v331
  %v344 = vmul.f32 %v317, %v331
  %v345 = vmul.f32 %v321, %v331
  %v346 = vmul.f32 %v325, %v331
  %v347 = vmul.f32 %v329, %v331
  %v348 = vadd.f32 %v250, %v332
  %v349 = vadd.f32 %v251, %v333
  %v350 = vadd.f32 %v252, %v334
  %v351 = vadd.f32 %v253, %v335
  %v352 = vadd.f32 %v254, %v336
  %v353 = vadd.f32 %v255, %v337
  %v354 = vadd.f32 %v256, %v338
  %v355 = vadd.f32 %v257, %v339
  %v356 = vadd.f32 %v258, %v340
  %v357 = vadd.f32 %v259, %v341
  %v358 = vadd.f32 %v260, %v342
  %v359 = vadd.f32 %v261, %v343
  %v360 = vadd.f32 %v262, %v344
  %v361 = vadd.f32 %v263, %v345
  %v362 = vadd.f32 %v264, %v346
  %v363 = vadd.f32 %v265, %v347
  %v364 = vld [vmem:[%s3 + $0x7] sm:$0x1]
  %365 = vset.pattern.permute.xlu0 3
  %366 = vperm.xlu0 %365, %v17
  %v367 = vpop.permute.xlu0 %366
  %369 = vset.pattern.permute.xlu0 3
  %370 = vperm.xlu0 %369, %v18
  %v371 = vpop.permute.xlu0 %370
  %373 = vset.pattern.permute.xlu0 3
  %374 = vperm.xlu0 %373, %v19
  %v375 = vpop.permute.xlu0 %374
  %377 = vset.pattern.permute.xlu0 3
  %378 = vperm.xlu0 %377, %v20
  %v379 = vpop.permute.xlu0 %378
  %381 = vset.pattern.permute.xlu0 3
  %382 = vperm.xlu0 %381, %v21
  %v383 = vpop.permute.xlu0 %382
  %385 = vset.pattern.permute.xlu0 3
  %386 = vperm.xlu0 %385, %v22
  %v387 = vpop.permute.xlu0 %386
  %389 = vset.pattern.permute.xlu0 3
  %390 = vperm.xlu0 %389, %v23
  %v391 = vpop.permute.xlu0 %390
  %393 = vset.pattern.permute.xlu0 3
  %394 = vperm.xlu0 %393, %v24
  %v395 = vpop.permute.xlu0 %394
  %397 = vset.pattern.permute.xlu0 3
  %398 = vperm.xlu0 %397, %v25
  %v399 = vpop.permute.xlu0 %398
  %401 = vset.pattern.permute.xlu0 3
  %402 = vperm.xlu0 %401, %v26
  %v403 = vpop.permute.xlu0 %402
  %405 = vset.pattern.permute.xlu0 3
  %406 = vperm.xlu0 %405, %v27
  %v407 = vpop.permute.xlu0 %406
  %409 = vset.pattern.permute.xlu0 3
  %410 = vperm.xlu0 %409, %v28
  %v411 = vpop.permute.xlu0 %410
  %413 = vset.pattern.permute.xlu0 3
  %414 = vperm.xlu0 %413, %v29
  %v415 = vpop.permute.xlu0 %414
  %417 = vset.pattern.permute.xlu0 3
  %418 = vperm.xlu0 %417, %v30
  %v419 = vpop.permute.xlu0 %418
  %421 = vset.pattern.permute.xlu0 3
  %422 = vperm.xlu0 %421, %v31
  %v423 = vpop.permute.xlu0 %422
  %425 = vset.pattern.permute.xlu0 3
  %426 = vperm.xlu0 %425, %v32
  %v427 = vpop.permute.xlu0 %426
  %v429 = vperm.slane %v364, 0
  %v430 = vmul.f32 %v367, %v429
  %v431 = vmul.f32 %v371, %v429
  %v432 = vmul.f32 %v375, %v429
  %v433 = vmul.f32 %v379, %v429
  %v434 = vmul.f32 %v383, %v429
  %v435 = vmul.f32 %v387, %v429
  %v436 = vmul.f32 %v391, %v429
  %v437 = vmul.f32 %v395, %v429
  %v438 = vmul.f32 %v399, %v429
  %v439 = vmul.f32 %v403, %v429
  %v440 = vmul.f32 %v407, %v429
  %v441 = vmul.f32 %v411, %v429
  %v442 = vmul.f32 %v415, %v429
  %v443 = vmul.f32 %v419, %v429
  %v444 = vmul.f32 %v423, %v429
  %v445 = vmul.f32 %v427, %v429
  %v446 = vadd.f32 %v348, %v430
  %v447 = vadd.f32 %v349, %v431
  %v448 = vadd.f32 %v350, %v432
  %v449 = vadd.f32 %v351, %v433
  %v450 = vadd.f32 %v352, %v434
  %v451 = vadd.f32 %v353, %v435
  %v452 = vadd.f32 %v354, %v436
  %v453 = vadd.f32 %v355, %v437
  %v454 = vadd.f32 %v356, %v438
  %v455 = vadd.f32 %v357, %v439
  %v456 = vadd.f32 %v358, %v440
  %v457 = vadd.f32 %v359, %v441
  %v458 = vadd.f32 %v360, %v442
  %v459 = vadd.f32 %v361, %v443
  %v460 = vadd.f32 %v362, %v444
  %v461 = vadd.f32 %v363, %v445
  %v462 = vld [vmem:[%s3 + $0x8] sm:$0x1]
  %464 = vset.pattern.permute.xlu0 0
  %465 = vperm.xlu0 %464, %v33
  %v466 = vpop.permute.xlu0 %465
  %469 = vset.pattern.permute.xlu0 0
  %470 = vperm.xlu0 %469, %v34
  %v471 = vpop.permute.xlu0 %470
  %474 = vset.pattern.permute.xlu0 0
  %475 = vperm.xlu0 %474, %v35
  %v476 = vpop.permute.xlu0 %475
  %479 = vset.pattern.permute.xlu0 0
  %480 = vperm.xlu0 %479, %v36
  %v481 = vpop.permute.xlu0 %480
  %484 = vset.pattern.permute.xlu0 0
  %485 = vperm.xlu0 %484, %v37
  %v486 = vpop.permute.xlu0 %485
  %489 = vset.pattern.permute.xlu0 0
  %490 = vperm.xlu0 %489, %v38
  %v491 = vpop.permute.xlu0 %490
  %494 = vset.pattern.permute.xlu0 0
  %495 = vperm.xlu0 %494, %v39
  %v496 = vpop.permute.xlu0 %495
  %499 = vset.pattern.permute.xlu0 0
  %500 = vperm.xlu0 %499, %v40
  %v501 = vpop.permute.xlu0 %500
  %504 = vset.pattern.permute.xlu0 0
  %505 = vperm.xlu0 %504, %v41
  %v506 = vpop.permute.xlu0 %505
  %509 = vset.pattern.permute.xlu0 0
  %510 = vperm.xlu0 %509, %v42
  %v511 = vpop.permute.xlu0 %510
  %514 = vset.pattern.permute.xlu0 0
  %515 = vperm.xlu0 %514, %v43
  %v516 = vpop.permute.xlu0 %515
  %519 = vset.pattern.permute.xlu0 0
  %520 = vperm.xlu0 %519, %v44
  %v521 = vpop.permute.xlu0 %520
  %524 = vset.pattern.permute.xlu0 0
  %525 = vperm.xlu0 %524, %v45
  %v526 = vpop.permute.xlu0 %525
  %529 = vset.pattern.permute.xlu0 0
  %530 = vperm.xlu0 %529, %v46
  %v531 = vpop.permute.xlu0 %530
  %534 = vset.pattern.permute.xlu0 0
  %535 = vperm.xlu0 %534, %v47
  %v536 = vpop.permute.xlu0 %535
  %539 = vset.pattern.permute.xlu0 0
  %540 = vperm.xlu0 %539, %v48
  %v541 = vpop.permute.xlu0 %540
  %v543 = vperm.slane %v462, 0
  %v544 = vmul.f32 %v466, %v543
  %v545 = vmul.f32 %v471, %v543
  %v546 = vmul.f32 %v476, %v543
  %v547 = vmul.f32 %v481, %v543
  %v548 = vmul.f32 %v486, %v543
  %v549 = vmul.f32 %v491, %v543
  %v550 = vmul.f32 %v496, %v543
  %v551 = vmul.f32 %v501, %v543
  %v552 = vmul.f32 %v506, %v543
  %v553 = vmul.f32 %v511, %v543
  %v554 = vmul.f32 %v516, %v543
  %v555 = vmul.f32 %v521, %v543
  %v556 = vmul.f32 %v526, %v543
  %v557 = vmul.f32 %v531, %v543
  %v558 = vmul.f32 %v536, %v543
  %v559 = vmul.f32 %v541, %v543
  %v560 = vadd.f32 %v446, %v544
  %v561 = vadd.f32 %v447, %v545
  %v562 = vadd.f32 %v448, %v546
  %v563 = vadd.f32 %v449, %v547
  %v564 = vadd.f32 %v450, %v548
  %v565 = vadd.f32 %v451, %v549
  %v566 = vadd.f32 %v452, %v550
  %v567 = vadd.f32 %v453, %v551
  %v568 = vadd.f32 %v454, %v552
  %v569 = vadd.f32 %v455, %v553
  %v570 = vadd.f32 %v456, %v554
  %v571 = vadd.f32 %v457, %v555
  %v572 = vadd.f32 %v458, %v556
  %v573 = vadd.f32 %v459, %v557
  %v574 = vadd.f32 %v460, %v558
  %v575 = vadd.f32 %v461, %v559
  %v576 = vmax.f32 %v560, 0.0
  %v577 = vmax.f32 %v561, 0.0
  %v578 = vmax.f32 %v562, 0.0
  %v579 = vmax.f32 %v563, 0.0
  %v580 = vmax.f32 %v564, 0.0
  %v581 = vmax.f32 %v565, 0.0
  %v582 = vmax.f32 %v566, 0.0
  %v583 = vmax.f32 %v567, 0.0
  %v584 = vmax.f32 %v568, 0.0
  %v585 = vmax.f32 %v569, 0.0
  %v586 = vmax.f32 %v570, 0.0
  %v587 = vmax.f32 %v571, 0.0
  %v588 = vmax.f32 %v572, 0.0
  %v589 = vmax.f32 %v573, 0.0
  %v590 = vmax.f32 %v574, 0.0
  %v591 = vmax.f32 %v575, 0.0
  %v592 = vpack.c.bf16 %v577, %v576
  %v593 = vpack.c.bf16 %v579, %v578
  %v594 = vpack.c.bf16 %v581, %v580
  %v595 = vpack.c.bf16 %v583, %v582
  %v596 = vpack.c.bf16 %v585, %v584
  %v597 = vpack.c.bf16 %v587, %v586
  %v598 = vpack.c.bf16 %v589, %v588
  %v599 = vpack.c.bf16 %v591, %v590
  %v600 = vld [vmem:[%s2] sm:$0xf]
  %v601 = vld [vmem:[%s2 + $0x4] sm:$0xf]
  %v602 = vld [vmem:[%s2 + $0x8] sm:$0xf]
  %v603 = vld [vmem:[%s2 + $0xc] sm:$0xf]
  %v604 = vld [vmem:[%s2 + $0x10] sm:$0xf]
  %v605 = vld [vmem:[%s2 + $0x14] sm:$0xf]
  %v606 = vld [vmem:[%s2 + $0x18] sm:$0xf]
  %v607 = vld [vmem:[%s2 + $0x1c] sm:$0xf]
  %v608 = vld [vmem:[%s2 + $0x20] sm:$0xf]
  %v609 = vld [vmem:[%s2 + $0x24] sm:$0xf]
  %v610 = vld [vmem:[%s2 + $0x28] sm:$0xf]
  %v611 = vld [vmem:[%s2 + $0x2c] sm:$0xf]
  %v612 = vld [vmem:[%s2 + $0x30] sm:$0xf]
  %v613 = vld [vmem:[%s2 + $0x34] sm:$0xf]
  %v614 = vld [vmem:[%s2 + $0x38] sm:$0xf]
  %v615 = vld [vmem:[%s2 + $0x3c] sm:$0xf]
  %v616 = vperm.slane %v50, 0
  %v633 = vunpack.c.l.b16 %v600
  %v634 = vunpack.c.l.b16 %v601
  %v635 = vunpack.c.l.b16 %v602
  %v636 = vunpack.c.l.b16 %v603
  %v637 = vunpack.c.l.b16 %v604
  %v638 = vunpack.c.l.b16 %v605
  %v639 = vunpack.c.l.b16 %v606
  %v640 = vunpack.c.l.b16 %v607
  %v641 = vunpack.c.l.b16 %v608
  %v642 = vunpack.c.l.b16 %v609
  %v643 = vunpack.c.l.b16 %v610
  %v644 = vunpack.c.l.b16 %v611
  %v645 = vunpack.c.l.b16 %v612
  %v646 = vunpack.c.l.b16 %v613
  %v647 = vunpack.c.l.b16 %v614
  %v648 = vunpack.c.l.b16 %v615
  %v649 = vpack.c.b16 %v634, %v633
  %v650 = vpack.c.b16 %v636, %v635
  %v651 = vpack.c.b16 %v638, %v637
  %v652 = vpack.c.b16 %v640, %v639
  %v653 = vpack.c.b16 %v642, %v641
  %v654 = vpack.c.b16 %v644, %v643
  %v655 = vpack.c.b16 %v646, %v645
  %v656 = vpack.c.b16 %v648, %v647
  %665 = vmatpush.bf16.msra.mxu0 %v656
  %666 = vmatpush.bf16.msra.mxu0 %v655
  %667 = vmatpush.bf16.msra.mxu0 %v654
  %668 = vmatpush.bf16.msra.mxu0 %v653
  %669 = vmatpush.bf16.msra.mxu0 %v652
  %670 = vmatpush.bf16.msra.mxu0 %v651
  %671 = vmatpush.bf16.msra.mxu0 %v650
  %672 = vmatpush.bf16.msra.mxu0 %v649
  %673 = vmatmul.bf16.gmra.mxu0 %v592
  %v674 = vpop.f32.mrf.mxu0
  %v675 = vadd.f32 %v616, %v674
  %v676 = vpop.f32.mrf.mxu0
  %v677 = vadd.f32 %v616, %v676
  %678 = vmatmul.bf16.gmra.mxu0 %v593
  %v679 = vpop.f32.mrf.mxu0
  %v680 = vadd.f32 %v616, %v679
  %v681 = vpop.f32.mrf.mxu0
  %v682 = vadd.f32 %v616, %v681
  %683 = vmatmul.bf16.gmra.mxu0 %v594
  %v684 = vpop.f32.mrf.mxu0
  %v685 = vadd.f32 %v616, %v684
  %v686 = vpop.f32.mrf.mxu0
  %v687 = vadd.f32 %v616, %v686
  %688 = vmatmul.bf16.gmra.mxu0 %v595
  %v689 = vpop.f32.mrf.mxu0
  %v690 = vadd.f32 %v616, %v689
  %v691 = vpop.f32.mrf.mxu0
  %v692 = vadd.f32 %v616, %v691
  %693 = vmatmul.bf16.gmra.mxu0 %v596
  %v694 = vpop.f32.mrf.mxu0
  %v695 = vadd.f32 %v616, %v694
  %v696 = vpop.f32.mrf.mxu0
  %v697 = vadd.f32 %v616, %v696
  %698 = vmatmul.bf16.gmra.mxu0 %v597
  %v699 = vpop.f32.mrf.mxu0
  %v700 = vadd.f32 %v616, %v699
  %v701 = vpop.f32.mrf.mxu0
  %v702 = vadd.f32 %v616, %v701
  %703 = vmatmul.bf16.gmra.mxu0 %v598
  %v704 = vpop.f32.mrf.mxu0
  %v705 = vadd.f32 %v616, %v704
  %v706 = vpop.f32.mrf.mxu0
  %v707 = vadd.f32 %v616, %v706
  %708 = vmatmul.bf16.gmra.mxu0 %v599
  %v709 = vpop.f32.mrf.mxu0
  %v710 = vadd.f32 %v616, %v709
  %v711 = vpop.f32.mrf.mxu0
  %v712 = vadd.f32 %v616, %v711
  %713 = vdwg.mxu0
  %v714 = vmax.f32 %v675, 0.0
  %v715 = vmax.f32 %v677, 0.0
  %v716 = vmax.f32 %v680, 0.0
  %v717 = vmax.f32 %v682, 0.0
  %v718 = vmax.f32 %v685, 0.0
  %v719 = vmax.f32 %v687, 0.0
  %v720 = vmax.f32 %v690, 0.0
  %v721 = vmax.f32 %v692, 0.0
  %v722 = vmax.f32 %v695, 0.0
  %v723 = vmax.f32 %v697, 0.0
  %v724 = vmax.f32 %v700, 0.0
  %v725 = vmax.f32 %v702, 0.0
  %v726 = vmax.f32 %v705, 0.0
  %v727 = vmax.f32 %v707, 0.0
  %v728 = vmax.f32 %v710, 0.0
  %v729 = vmax.f32 %v712, 0.0
  %v730 = vpack.c.bf16 %v715, %v714
  %v731 = vpack.c.bf16 %v717, %v716
  %v732 = vpack.c.bf16 %v719, %v718
  %v733 = vpack.c.bf16 %v721, %v720
  %v734 = vpack.c.bf16 %v723, %v722
  %v735 = vpack.c.bf16 %v725, %v724
  %v736 = vpack.c.bf16 %v727, %v726
  %v737 = vpack.c.bf16 %v729, %v728
  %v738 = vld [vmem:[%s2 + $0x40] sm:$0xf]
  %v739 = vld [vmem:[%s2 + $0x44] sm:$0xf]
  %v740 = vld [vmem:[%s2 + $0x48] sm:$0xf]
  %v741 = vld [vmem:[%s2 + $0x4c] sm:$0xf]
  %v742 = vld [vmem:[%s2 + $0x50] sm:$0xf]
  %v743 = vld [vmem:[%s2 + $0x54] sm:$0xf]
  %v744 = vld [vmem:[%s2 + $0x58] sm:$0xf]
  %v745 = vld [vmem:[%s2 + $0x5c] sm:$0xf]
  %v746 = vld [vmem:[%s2 + $0x60] sm:$0xf]
  %v747 = vld [vmem:[%s2 + $0x64] sm:$0xf]
  %v748 = vld [vmem:[%s2 + $0x68] sm:$0xf]
  %v749 = vld [vmem:[%s2 + $0x6c] sm:$0xf]
  %v750 = vld [vmem:[%s2 + $0x70] sm:$0xf]
  %v751 = vld [vmem:[%s2 + $0x74] sm:$0xf]
  %v752 = vld [vmem:[%s2 + $0x78] sm:$0xf]
  %v753 = vld [vmem:[%s2 + $0x7c] sm:$0xf]
  %v754 = vperm.slane %v51, 0
  %v771 = vunpack.c.l.b16 %v738
  %v772 = vunpack.c.l.b16 %v739
  %v773 = vunpack.c.l.b16 %v740
  %v774 = vunpack.c.l.b16 %v741
  %v775 = vunpack.c.l.b16 %v742
  %v776 = vunpack.c.l.b16 %v743
  %v777 = vunpack.c.l.b16 %v744
  %v778 = vunpack.c.l.b16 %v745
  %v779 = vunpack.c.l.b16 %v746
  %v780 = vunpack.c.l.b16 %v747
  %v781 = vunpack.c.l.b16 %v748
  %v782 = vunpack.c.l.b16 %v749
  %v783 = vunpack.c.l.b16 %v750
  %v784 = vunpack.c.l.b16 %v751
  %v785 = vunpack.c.l.b16 %v752
  %v786 = vunpack.c.l.b16 %v753
  %v787 = vpack.c.b16 %v772, %v771
  %v788 = vpack.c.b16 %v774, %v773
  %v789 = vpack.c.b16 %v776, %v775
  %v790 = vpack.c.b16 %v778, %v777
  %v791 = vpack.c.b16 %v780, %v779
  %v792 = vpack.c.b16 %v782, %v781
  %v793 = vpack.c.b16 %v784, %v783
  %v794 = vpack.c.b16 %v786, %v785
  %803 = vmatpush.bf16.msra.mxu0 %v794
  %804 = vmatpush.bf16.msra.mxu0 %v793
  %805 = vmatpush.bf16.msra.mxu0 %v792
  %806 = vmatpush.bf16.msra.mxu0 %v791
  %807 = vmatpush.bf16.msra.mxu0 %v790
  %808 = vmatpush.bf16.msra.mxu0 %v789
  %809 = vmatpush.bf16.msra.mxu0 %v788
  %810 = vmatpush.bf16.msra.mxu0 %v787
  %811 = vmatmul.bf16.gmra.mxu0 %v730
  %v812 = vpop.f32.mrf.mxu0
  %v813 = vadd.f32 %v754, %v812
  %v814 = vpop.f32.mrf.mxu0
  %v815 = vadd.f32 %v754, %v814
  %816 = vmatmul.bf16.gmra.mxu0 %v731
  %v817 = vpop.f32.mrf.mxu0
  %v818 = vadd.f32 %v754, %v817
  %v819 = vpop.f32.mrf.mxu0
  %v820 = vadd.f32 %v754, %v819
  %821 = vmatmul.bf16.gmra.mxu0 %v732
  %v822 = vpop.f32.mrf.mxu0
  %v823 = vadd.f32 %v754, %v822
  %v824 = vpop.f32.mrf.mxu0
  %v825 = vadd.f32 %v754, %v824
  %826 = vmatmul.bf16.gmra.mxu0 %v733
  %v827 = vpop.f32.mrf.mxu0
  %v828 = vadd.f32 %v754, %v827
  %v829 = vpop.f32.mrf.mxu0
  %v830 = vadd.f32 %v754, %v829
  %831 = vmatmul.bf16.gmra.mxu0 %v734
  %v832 = vpop.f32.mrf.mxu0
  %v833 = vadd.f32 %v754, %v832
  %v834 = vpop.f32.mrf.mxu0
  %v835 = vadd.f32 %v754, %v834
  %836 = vmatmul.bf16.gmra.mxu0 %v735
  %v837 = vpop.f32.mrf.mxu0
  %v838 = vadd.f32 %v754, %v837
  %v839 = vpop.f32.mrf.mxu0
  %v840 = vadd.f32 %v754, %v839
  %841 = vmatmul.bf16.gmra.mxu0 %v736
  %v842 = vpop.f32.mrf.mxu0
  %v843 = vadd.f32 %v754, %v842
  %v844 = vpop.f32.mrf.mxu0
  %v845 = vadd.f32 %v754, %v844
  %846 = vmatmul.bf16.gmra.mxu0 %v737
  %v847 = vpop.f32.mrf.mxu0
  %v848 = vadd.f32 %v754, %v847
  %v849 = vpop.f32.mrf.mxu0
  %v850 = vadd.f32 %v754, %v849
  %851 = vdwg.mxu0
  %v852 = vmax.f32 %v813, 0.0
  %v853 = vmax.f32 %v815, 0.0
  %v854 = vmax.f32 %v818, 0.0
  %v855 = vmax.f32 %v820, 0.0
  %v856 = vmax.f32 %v823, 0.0
  %v857 = vmax.f32 %v825, 0.0
  %v858 = vmax.f32 %v828, 0.0
  %v859 = vmax.f32 %v830, 0.0
  %v860 = vmax.f32 %v833, 0.0
  %v861 = vmax.f32 %v835, 0.0
  %v862 = vmax.f32 %v838, 0.0
  %v863 = vmax.f32 %v840, 0.0
  %v864 = vmax.f32 %v843, 0.0
  %v865 = vmax.f32 %v845, 0.0
  %v866 = vmax.f32 %v848, 0.0
  %v867 = vmax.f32 %v850, 0.0
  %v868 = vpack.c.bf16 %v853, %v852
  %v869 = vpack.c.bf16 %v855, %v854
  %v870 = vpack.c.bf16 %v857, %v856
  %v871 = vpack.c.bf16 %v859, %v858
  %v872 = vpack.c.bf16 %v861, %v860
  %v873 = vpack.c.bf16 %v863, %v862
  %v874 = vpack.c.bf16 %v865, %v864
  %v875 = vpack.c.bf16 %v867, %v866
  %v876 = vld [vmem:[%s2 + $0x80] sm:$0xf]
  %v877 = vld [vmem:[%s2 + $0x84] sm:$0xf]
  %v878 = vld [vmem:[%s2 + $0x88] sm:$0xf]
  %v879 = vld [vmem:[%s2 + $0x8c] sm:$0xf]
  %v880 = vld [vmem:[%s2 + $0x90] sm:$0xf]
  %v881 = vld [vmem:[%s2 + $0x94] sm:$0xf]
  %v882 = vld [vmem:[%s2 + $0x98] sm:$0xf]
  %v883 = vld [vmem:[%s2 + $0x9c] sm:$0xf]
  %v884 = vld [vmem:[%s2 + $0xa0] sm:$0xf]
  %v885 = vld [vmem:[%s2 + $0xa4] sm:$0xf]
  %v886 = vld [vmem:[%s2 + $0xa8] sm:$0xf]
  %v887 = vld [vmem:[%s2 + $0xac] sm:$0xf]
  %v888 = vld [vmem:[%s2 + $0xb0] sm:$0xf]
  %v889 = vld [vmem:[%s2 + $0xb4] sm:$0xf]
  %v890 = vld [vmem:[%s2 + $0xb8] sm:$0xf]
  %v891 = vld [vmem:[%s2 + $0xbc] sm:$0xf]
  %v892 = vperm.slane %v52, 0
  %v909 = vunpack.c.l.b16 %v876
  %v910 = vunpack.c.l.b16 %v877
  %v911 = vunpack.c.l.b16 %v878
  %v912 = vunpack.c.l.b16 %v879
  %v913 = vunpack.c.l.b16 %v880
  %v914 = vunpack.c.l.b16 %v881
  %v915 = vunpack.c.l.b16 %v882
  %v916 = vunpack.c.l.b16 %v883
  %v917 = vunpack.c.l.b16 %v884
  %v918 = vunpack.c.l.b16 %v885
  %v919 = vunpack.c.l.b16 %v886
  %v920 = vunpack.c.l.b16 %v887
  %v921 = vunpack.c.l.b16 %v888
  %v922 = vunpack.c.l.b16 %v889
  %v923 = vunpack.c.l.b16 %v890
  %v924 = vunpack.c.l.b16 %v891
  %v925 = vpack.c.b16 %v910, %v909
  %v926 = vpack.c.b16 %v912, %v911
  %v927 = vpack.c.b16 %v914, %v913
  %v928 = vpack.c.b16 %v916, %v915
  %v929 = vpack.c.b16 %v918, %v917
  %v930 = vpack.c.b16 %v920, %v919
  %v931 = vpack.c.b16 %v922, %v921
  %v932 = vpack.c.b16 %v924, %v923
  %941 = vmatpush.bf16.msra.mxu0 %v932
  %942 = vmatpush.bf16.msra.mxu0 %v931
  %943 = vmatpush.bf16.msra.mxu0 %v930
  %944 = vmatpush.bf16.msra.mxu0 %v929
  %945 = vmatpush.bf16.msra.mxu0 %v928
  %946 = vmatpush.bf16.msra.mxu0 %v927
  %947 = vmatpush.bf16.msra.mxu0 %v926
  %948 = vmatpush.bf16.msra.mxu0 %v925
  %949 = vmatmul.bf16.gmra.mxu0 %v868
  %v950 = vpop.f32.mrf.mxu0
  %v951 = vadd.f32 %v892, %v950
  %v952 = vpop.f32.mrf.mxu0
  %v953 = vadd.f32 %v892, %v952
  %954 = vmatmul.bf16.gmra.mxu0 %v869
  %v955 = vpop.f32.mrf.mxu0
  %v956 = vadd.f32 %v892, %v955
  %v957 = vpop.f32.mrf.mxu0
  %v958 = vadd.f32 %v892, %v957
  %959 = vmatmul.bf16.gmra.mxu0 %v870
  %v960 = vpop.f32.mrf.mxu0
  %v961 = vadd.f32 %v892, %v960
  %v962 = vpop.f32.mrf.mxu0
  %v963 = vadd.f32 %v892, %v962
  %964 = vmatmul.bf16.gmra.mxu0 %v871
  %v965 = vpop.f32.mrf.mxu0
  %v966 = vadd.f32 %v892, %v965
  %v967 = vpop.f32.mrf.mxu0
  %v968 = vadd.f32 %v892, %v967
  %969 = vmatmul.bf16.gmra.mxu0 %v872
  %v970 = vpop.f32.mrf.mxu0
  %v971 = vadd.f32 %v892, %v970
  %v972 = vpop.f32.mrf.mxu0
  %v973 = vadd.f32 %v892, %v972
  %974 = vmatmul.bf16.gmra.mxu0 %v873
  %v975 = vpop.f32.mrf.mxu0
  %v976 = vadd.f32 %v892, %v975
  %v977 = vpop.f32.mrf.mxu0
  %v978 = vadd.f32 %v892, %v977
  %979 = vmatmul.bf16.gmra.mxu0 %v874
  %v980 = vpop.f32.mrf.mxu0
  %v981 = vadd.f32 %v892, %v980
  %v982 = vpop.f32.mrf.mxu0
  %v983 = vadd.f32 %v892, %v982
  %984 = vmatmul.bf16.gmra.mxu0 %v875
  %v985 = vpop.f32.mrf.mxu0
  %v986 = vadd.f32 %v892, %v985
  %v987 = vpop.f32.mrf.mxu0
  %v988 = vadd.f32 %v892, %v987
  %989 = vdwg.mxu0
  %990 = vxpose.xlu0.b32.start [1/16] %v951, 128
  %991 = vxpose.xlu0.b32.cont [2/16] %v953, 128
  %992 = vxpose.xlu0.b32.cont [3/16] %v956, 128
  %993 = vxpose.xlu0.b32.cont [4/16] %v958, 128
  %994 = vxpose.xlu0.b32.cont [5/16] %v961, 128
  %995 = vxpose.xlu0.b32.cont [6/16] %v963, 128
  %996 = vxpose.xlu0.b32.cont [7/16] %v966, 128
  %997 = vxpose.xlu0.b32.cont [8/16] %v968, 128
  %998 = vxpose.xlu0.b32.cont [9/16] %v971, 128
  %999 = vxpose.xlu0.b32.cont [10/16] %v973, 128
  %1000 = vxpose.xlu0.b32.cont [11/16] %v976, 128
  %1001 = vxpose.xlu0.b32.cont [12/16] %v978, 128
  %1002 = vxpose.xlu0.b32.cont [13/16] %v981, 128
  %1003 = vxpose.xlu0.b32.cont [14/16] %v983, 128
  %1004 = vxpose.xlu0.b32.cont [15/16] %v986, 128
  %1005 = vxpose.xlu0.b32.end [16/16] %v988, 128
  %v1006 = vpop.trf.xlu0
  %v1007 = vpop.trf.xlu0
  %v1008 = vpop.trf.xlu0
  %v1009 = vpop.trf.xlu0
  %v1010 = vpop.trf.xlu0
  %v1011 = vpop.trf.xlu0
  %v1012 = vpop.trf.xlu0
  %v1013 = vpop.trf.xlu0
  %v1014 = vpop.trf.xlu0
  %v1015 = vpop.trf.xlu0
  %v1016 = vpop.trf.xlu0
  %v1017 = vpop.trf.xlu0
  %v1018 = vpop.trf.xlu0
  %v1019 = vpop.trf.xlu0
  %v1020 = vpop.trf.xlu0
  %v1021 = vpop.trf.xlu0
  %1022 = vst [vmem:[%s4] sm:$0xff] %v1006
  // Predicated region
  $region18: #{critic_forward.1} parent=0 // pred_check
    _
  $region19: #{critic_forward.1} parent=0 // pred_check_branch
    %1024 = sbr.rel (0) target = $region21
  $region20: #{critic_forward.1} parent=0 // pred_region
    _
  $region21: #{critic_forward.1} parent=0 // pred_fallthru
    _
  // Predicated region
  $region22: #{critic_forward.1} parent=0 // pred_check
    _
  $region23: #{critic_forward.1} parent=0 // pred_check_branch
    %1026 = sbr.rel (0) target = $region25
  $region24: #{critic_forward.1} parent=0 // pred_region
    _
  $region25: #{critic_forward.1} parent=0 // pred_fallthru
    _

</llo_original>
